<compile_context>
chip_gen: v7x
topology: tpu7x:2x2x1
jax: 0.10.0
libtpu: 0.0.40
codegen_flags: <defaults>
</compile_context>

<pallas_src>
import functools
import math

import jax
import jax.numpy as jnp
from jax import lax
from jax.experimental import pallas as pl
from jax.experimental.pallas import tpu as pltpu

_LANE = 128        # lane width: pad every feature dim to a multiple of this
_SUBLANE = 8       # sublane granularity for the row (token) axis
_FUSED_VMEM_BUDGET = 48 * 1024 * 1024   # conservative for v7x (64 MiB physical)


def _round_up(x, m):
    return ((x + m - 1) // m) * m


def _gelu_erf(x):
    # exact (erf) GELU, matching torch.nn.GELU() default
    return 0.5 * x * (1.0 + lax.erf(x * (1.0 / math.sqrt(2.0))))


# -----------------------------------------------------------------------------
# Fused path: all layers in one kernel, intermediates stay on-chip.
# -----------------------------------------------------------------------------
def _fused_mlp_kernel(x_ref, *refs, num_layers, compute_dtype):
    """refs = (w0, b0, w1, b1, ..., o_ref). One row tile through all layers."""
    o_ref = refs[-1]
    h = x_ref[...]
    for i in range(num_layers):
        w = refs[2 * i][...]
        b = refs[2 * i + 1][...]                      # (1, N) f32
        acc = jnp.dot(h.astype(compute_dtype), w,
                      preferred_element_type=jnp.float32)
        acc = acc + b.astype(jnp.float32)
        if i < num_layers - 1:
            acc = _gelu_erf(acc)                      # f32 epilogue (v5e safe)
            h = acc.astype(compute_dtype)             # stays in VMEM / vregs
        else:
            h = acc
    o_ref[...] = h.astype(o_ref.dtype)


def _fused_vmem_estimate(tm, dims_p, compute_dtype, out_dtype):
    cb = jnp.dtype(compute_dtype).itemsize
    ob = jnp.dtype(out_dtype).itemsize
    est = 2 * tm * dims_p[0] * cb                                 # x tile (2-buf)
    for kin_p, kout_p in zip(dims_p[:-1], dims_p[1:]):
        est += 2 * (kin_p * kout_p * cb + kout_p * 4)             # weights+bias
    est += 2 * tm * dims_p[-1] * ob                               # output tile
    est += 4 * tm * max(dims_p) * 4                               # live intermediates
    return est


def fused_mlp(x2d, params, *, compute_dtype=jnp.float32, tm=256):
    """x2d: (M, input_dim) -> (M, output_dim); whole stack in one pallas_call."""
    M, K0 = x2d.shape
    num_layers = len(params)
    dims = [K0] + [w.shape[1] for (w, _) in params]
    dims_p = [_round_up(d, _LANE) for d in dims]                  # lane-dense
    Mp = _round_up(M, tm)

    x_p = jnp.zeros((Mp, dims_p[0]), compute_dtype)
    x_p = x_p.at[:M, :K0].set(x2d.astype(compute_dtype))

    inputs = [x_p]
    in_specs = [pl.BlockSpec((tm, dims_p[0]), lambda i: (i, 0))]
    for li, (w, b) in enumerate(params):
        kin, kout = w.shape
        kin_p, kout_p = dims_p[li], dims_p[li + 1]
        w_p = jnp.zeros((kin_p, kout_p), compute_dtype)
        w_p = w_p.at[:kin, :kout].set(w.astype(compute_dtype))
        b_p = jnp.zeros((1, kout_p), jnp.float32)
        b_p = b_p.at[0, :kout].set(b.astype(jnp.float32))
        inputs += [w_p, b_p]
        in_specs += [pl.BlockSpec((kin_p, kout_p), lambda i: (0, 0)),
                     pl.BlockSpec((1, kout_p), lambda i: (0, 0))]

    out_p = dims_p[-1]
    est = _fused_vmem_estimate(tm, dims_p, compute_dtype, x2d.dtype)
    vmem_limit = None
    if est > (32 << 20):                    # raise past default scoped VMEM
        vmem_limit = min(est + (8 << 20), 64 << 20)

    kernel = functools.partial(_fused_mlp_kernel, num_layers=num_layers,
                               compute_dtype=compute_dtype)
    out = pl.pallas_call(
        kernel,
        out_shape=jax.ShapeDtypeStruct((Mp, out_p), x2d.dtype),
        grid_spec=pltpu.PrefetchScalarGridSpec(
            num_scalar_prefetch=0,
            grid=(Mp // tm,),
            in_specs=in_specs,
            out_specs=pl.BlockSpec((tm, out_p), lambda i: (i, 0)),
        ),
        compiler_params=pltpu.CompilerParams(
            dimension_semantics=("parallel",),
            vmem_limit_bytes=vmem_limit,
        ),
    )(*inputs)
    return out[:M, :dims[-1]]


# -----------------------------------------------------------------------------
# Fallback path: per-layer matmul tiled over (M, N, K) with f32 accumulator.
# Used when the summed weights don't fit the fused-path VMEM budget (e.g. v7x).
# -----------------------------------------------------------------------------
def _linear_tiled_kernel(x_ref, w_ref, b_ref, o_ref, acc_ref, *, apply_gelu):
    @pl.when(pl.program_id(2) == 0)
    def _():
        acc_ref[...] = jnp.zeros_like(acc_ref)

    acc_ref[...] += jnp.dot(x_ref[...], w_ref[...],
                            preferred_element_type=jnp.float32)

    @pl.when(pl.program_id(2) == pl.num_programs(2) - 1)
    def _():
        acc = acc_ref[...] + b_ref[...].astype(jnp.float32)
        if apply_gelu:
            acc = _gelu_erf(acc)
        o_ref[...] = acc.astype(o_ref.dtype)


def pallas_linear_tiled(x2d, w, b, *, apply_gelu, compute_dtype=jnp.float32,
                        tm=256, tn=256, tk=512):
    """out = [gelu](x @ w + b) with (M, N, K) tiling; weight never fully resident."""
    M, K = x2d.shape
    _, N = w.shape
    tk = min(tk, _round_up(K, _LANE))
    tn = min(tn, _round_up(N, _LANE))
    Mp = _round_up(M, tm)
    Kp = _round_up(K, tk)
    Np = _round_up(N, tn)

    x_p = jnp.zeros((Mp, Kp), compute_dtype).at[:M, :K].set(x2d.astype(compute_dtype))
    w_p = jnp.zeros((Kp, Np), compute_dtype).at[:K, :N].set(w.astype(compute_dtype))
    b_p = jnp.zeros((1, Np), jnp.float32).at[0, :N].set(b.astype(jnp.float32))

    kernel = functools.partial(_linear_tiled_kernel, apply_gelu=apply_gelu)
    out = pl.pallas_call(
        kernel,
        out_shape=jax.ShapeDtypeStruct((Mp, Np), jnp.float32),
        grid_spec=pltpu.PrefetchScalarGridSpec(
            num_scalar_prefetch=0,
            grid=(Mp // tm, Np // tn, Kp // tk),
            in_specs=[
                pl.BlockSpec((tm, tk), lambda i, j, k: (i, k)),
                pl.BlockSpec((tk, tn), lambda i, j, k: (k, j)),
                pl.BlockSpec((1, tn), lambda i, j, k: (0, j)),
            ],
            out_specs=pl.BlockSpec((tm, tn), lambda i, j, k: (i, j)),
            scratch_shapes=[pltpu.VMEM((tm, tn), jnp.float32)],
        ),
        compiler_params=pltpu.CompilerParams(
            dimension_semantics=("parallel", "parallel", "arbitrary"),
        ),
    )(x_p, w_p, b_p)
    return out[:M, :N]


# -----------------------------------------------------------------------------
# Module-level forward + init + reference
# -----------------------------------------------------------------------------
def mlp_forward(x, params, *, compute_dtype=jnp.float32, tm=256, fused=None):
    """x: (batch, seq, input_dim) -> (batch, seq, output_dim)."""
    batch, seq, in_dim = x.shape
    M = batch * seq
    h = x.reshape(M, in_dim)

    # Don't make the tile larger than the (sublane-rounded) token count.
    tm_eff = max(_SUBLANE, min(tm, _round_up(M, _SUBLANE)))

    dims = [in_dim] + [w.shape[1] for (w, _) in params]
    dims_p = [_round_up(d, _LANE) for d in dims]
    if fused is None:
        fused = _fused_vmem_estimate(tm_eff, dims_p, compute_dtype,
                                     x.dtype) <= _FUSED_VMEM_BUDGET

    if fused:
        out2d = fused_mlp(h, params, compute_dtype=compute_dtype, tm=tm_eff)
    else:
        num_layers = len(params)
        for i, (w, b) in enumerate(params):
            h = pallas_linear_tiled(h, w, b, apply_gelu=(i < num_layers - 1),
                                    compute_dtype=compute_dtype, tm=tm_eff)
        out2d = h
    return out2d.reshape(batch, seq, dims[-1])


def _trunc_normal(key, shape, std=0.02, a=-0.02, b=0.02):
    # trunc_normal_(std=0.02, a=-0.02, b=0.02): bounds are +/- 1 std
    lo = a / std
    hi = b / std
    return jax.random.truncated_normal(key, lo, hi, shape, jnp.float32) * std


def init_mlp_params(key, input_dim, hidden_dim, output_dim, num_layers):
    h = [hidden_dim] * (num_layers - 1)
    in_dims = [input_dim] + h
    out_dims = h + [output_dim]
    params = []
    for n, k in zip(in_dims, out_dims):
        key, wk = jax.random.split(key)
        # PyTorch Linear weight is (out, in); generate that way then transpose
        # to (in, out) for the kernel's x @ w layout.
        w_pt = _trunc_normal(wk, (k, n))
        w = jnp.transpose(w_pt)                 # (in, out)
        b = jnp.zeros((k,), jnp.float32)        # bias init = 0
        params.append((w, b))
    return params


def mlp_reference(x, params):
    """Plain-JAX reference for sanity checking (f32, exact-erf GELU)."""
    h = x
    num_layers = len(params)
    for i, (w, b) in enumerate(params):
        h = jnp.einsum("bsk,kn->bsn", h, w,
                       precision=lax.Precision.HIGHEST) + b
        if i < num_layers - 1:
            h = _gelu_erf(h)
    return h


if __name__ == "__main__":
    input_dim, hidden_dim, output_dim, num_layers = 32, 64, 16, 3
    batch, seq = 2, 8

    key = jax.random.PRNGKey(0)
    pkey, xkey = jax.random.split(key)
    params = init_mlp_params(pkey, input_dim, hidden_dim, output_dim, num_layers)
    x = jax.random.normal(xkey, (batch, seq, input_dim), jnp.float32)

    ref = mlp_reference(x, params)

    # 1) fused single-kernel path, f32 compute (exact parity with PyTorch).
    out = jax.block_until_ready(mlp_forward(x, params))
    assert out.shape == (batch, seq, output_dim)
    assert jnp.allclose(out, ref, atol=1e-5, rtol=1e-5)

    # 2) per-layer tiled fallback path (what a v7x-sized model would use).
    out_tiled = jax.block_until_ready(mlp_forward(x, params, fused=False))
    assert out_tiled.shape == (batch, seq, output_dim)
    assert jnp.allclose(out_tiled, ref, atol=1e-5, rtol=1e-5)

    # 3) bf16-compute fused path (MXU throughput mode, f32 accumulation).
    out_bf16 = jax.block_until_ready(
        mlp_forward(x, params, compute_dtype=jnp.bfloat16))
    assert out_bf16.shape == (batch, seq, output_dim)
    assert jnp.allclose(out_bf16, ref, atol=3e-2, rtol=3e-2)

    print("KERNEL_OK")
</pallas_src>

<mosaic_0001>
module attributes {stable_mosaic.version = 11 : i64} {
  func.func @_fused_mlp_kernel(%arg0: i32, %arg1: memref<16x128xf32, #tpu.memory_space<vmem>>, %arg2: memref<128x128xf32, #tpu.memory_space<vmem>>, %arg3: memref<1x128xf32, #tpu.memory_space<vmem>>, %arg4: memref<128x128xf32, #tpu.memory_space<vmem>>, %arg5: memref<1x128xf32, #tpu.memory_space<vmem>>, %arg6: memref<128x128xf32, #tpu.memory_space<vmem>>, %arg7: memref<1x128xf32, #tpu.memory_space<vmem>>, %arg8: memref<16x128xf32, #tpu.memory_space<vmem>>) attributes {dimension_semantics = [#tpu.dimension_semantics<parallel>], iteration_bounds = array<i64: 1>, scalar_prefetch = 0 : i64, scratch_operands = 0 : i64, tpu.core_type = #tpu.core_type<tc>, window_params = [{transform_indices = @transform_0, window_bounds = array<i64: 16, 128>}, {pipeline_mode = #tpu.pipeline_mode<synchronous>, transform_indices = @transform_1, window_bounds = array<i64: 128, 128>}, {pipeline_mode = #tpu.pipeline_mode<synchronous>, transform_indices = @transform_2, window_bounds = array<i64: 1, 128>}, {pipeline_mode = #tpu.pipeline_mode<synchronous>, transform_indices = @transform_3, window_bounds = array<i64: 128, 128>}, {pipeline_mode = #tpu.pipeline_mode<synchronous>, transform_indices = @transform_4, window_bounds = array<i64: 1, 128>}, {pipeline_mode = #tpu.pipeline_mode<synchronous>, transform_indices = @transform_5, window_bounds = array<i64: 128, 128>}, {pipeline_mode = #tpu.pipeline_mode<synchronous>, transform_indices = @transform_6, window_bounds = array<i64: 1, 128>}, {transform_indices = @transform_7, window_bounds = array<i64: 16, 128>}]} {
    %c0 = arith.constant 0 : index
    %c0_0 = arith.constant 0 : index
    %0 = vector.load %arg1[%c0, %c0_0] : memref<16x128xf32, #tpu.memory_space<vmem>>, vector<16x128xf32>
    %c0_1 = arith.constant 0 : index
    %c0_2 = arith.constant 0 : index
    %1 = vector.load %arg2[%c0_1, %c0_2] : memref<128x128xf32, #tpu.memory_space<vmem>>, vector<128x128xf32>
    %c0_3 = arith.constant 0 : index
    %c0_4 = arith.constant 0 : index
    %2 = vector.load %arg3[%c0_3, %c0_4] : memref<1x128xf32, #tpu.memory_space<vmem>>, vector<1x128xf32>
    %cst = arith.constant dense<0.000000e+00> : vector<16x128xf32>
    %3 = tpu.matmul %0, %1, %cst {dimension_numbers = #tpu.dot_dimension_numbers<[1], [0], [0], [1], [0, 0, 1, 1], [], []>} : vector<16x128xf32>, vector<128x128xf32>, vector<16x128xf32> -> vector<16x128xf32>
    %4 = vector.broadcast %2 : vector<1x128xf32> to vector<16x128xf32>
    %5 = arith.addf %3, %4 : vector<16x128xf32>
    %cst_5 = arith.constant 5.000000e-01 : f32
    %6 = vector.broadcast %cst_5 : f32 to vector<16x128xf32>
    %7 = arith.mulf %6, %5 : vector<16x128xf32>
    %cst_6 = arith.constant 0.707106769 : f32
    %8 = vector.broadcast %cst_6 : f32 to vector<16x128xf32>
    %9 = arith.mulf %5, %8 : vector<16x128xf32>
    %10 = math.erf %9 : vector<16x128xf32>
    %cst_7 = arith.constant 1.000000e+00 : f32
    %11 = vector.broadcast %cst_7 : f32 to vector<16x128xf32>
    %12 = arith.addf %11, %10 : vector<16x128xf32>
    %13 = arith.mulf %7, %12 : vector<16x128xf32>
    %c0_8 = arith.constant 0 : index
    %c0_9 = arith.constant 0 : index
    %14 = vector.load %arg4[%c0_8, %c0_9] : memref<128x128xf32, #tpu.memory_space<vmem>>, vector<128x128xf32>
    %c0_10 = arith.constant 0 : index
    %c0_11 = arith.constant 0 : index
    %15 = vector.load %arg5[%c0_10, %c0_11] : memref<1x128xf32, #tpu.memory_space<vmem>>, vector<1x128xf32>
    %cst_12 = arith.constant dense<0.000000e+00> : vector<16x128xf32>
    %16 = tpu.matmul %13, %14, %cst_12 {dimension_numbers = #tpu.dot_dimension_numbers<[1], [0], [0], [1], [0, 0, 1, 1], [], []>} : vector<16x128xf32>, vector<128x128xf32>, vector<16x128xf32> -> vector<16x128xf32>
    %17 = vector.broadcast %15 : vector<1x128xf32> to vector<16x128xf32>
    %18 = arith.addf %16, %17 : vector<16x128xf32>
    %cst_13 = arith.constant 5.000000e-01 : f32
    %19 = vector.broadcast %cst_13 : f32 to vector<16x128xf32>
    %20 = arith.mulf %19, %18 : vector<16x128xf32>
    %cst_14 = arith.constant 0.707106769 : f32
    %21 = vector.broadcast %cst_14 : f32 to vector<16x128xf32>
    %22 = arith.mulf %18, %21 : vector<16x128xf32>
    %23 = math.erf %22 : vector<16x128xf32>
    %cst_15 = arith.constant 1.000000e+00 : f32
    %24 = vector.broadcast %cst_15 : f32 to vector<16x128xf32>
    %25 = arith.addf %24, %23 : vector<16x128xf32>
    %26 = arith.mulf %20, %25 : vector<16x128xf32>
    %c0_16 = arith.constant 0 : index
    %c0_17 = arith.constant 0 : index
    %27 = vector.load %arg6[%c0_16, %c0_17] : memref<128x128xf32, #tpu.memory_space<vmem>>, vector<128x128xf32>
    %c0_18 = arith.constant 0 : index
    %c0_19 = arith.constant 0 : index
    %28 = vector.load %arg7[%c0_18, %c0_19] : memref<1x128xf32, #tpu.memory_space<vmem>>, vector<1x128xf32>
    %cst_20 = arith.constant dense<0.000000e+00> : vector<16x128xf32>
    %29 = tpu.matmul %26, %27, %cst_20 {dimension_numbers = #tpu.dot_dimension_numbers<[1], [0], [0], [1], [0, 0, 1, 1], [], []>} : vector<16x128xf32>, vector<128x128xf32>, vector<16x128xf32> -> vector<16x128xf32>
    %30 = vector.broadcast %28 : vector<1x128xf32> to vector<16x128xf32>
    %31 = arith.addf %29, %30 : vector<16x128xf32>
    %c0_21 = arith.constant 0 : index
    %c0_22 = arith.constant 0 : index
    %32 = vector.load %arg8[%c0_21, %c0_22] : memref<16x128xf32, #tpu.memory_space<vmem>>, vector<16x128xf32>
    tpu.vector_store %arg8[%c0_21, %c0_22], %31 {strides = array<i32>} : memref<16x128xf32, #tpu.memory_space<vmem>>, vector<16x128xf32>,
    return
  }
  func.func @transform_0(%arg0: i32) -> (i32, i32) {
    %c0_i32 = arith.constant 0 : i32
    %c0_i32_0 = arith.constant 0 : i32
    return %arg0, %c0_i32 : i32, i32
  }
  func.func @transform_1(%arg0: i32) -> (i32, i32) {
    %c0_i32 = arith.constant 0 : i32
    %c0_i32_0 = arith.constant 0 : i32
    %c0_i32_1 = arith.constant 0 : i32
    return %c0_i32, %c0_i32_0 : i32, i32
  }
  func.func @transform_2(%arg0: i32) -> (i32, i32) {
    %c0_i32 = arith.constant 0 : i32
    %c0_i32_0 = arith.constant 0 : i32
    %c0_i32_1 = arith.constant 0 : i32
    return %c0_i32, %c0_i32_0 : i32, i32
  }
  func.func @transform_3(%arg0: i32) -> (i32, i32) {
    %c0_i32 = arith.constant 0 : i32
    %c0_i32_0 = arith.constant 0 : i32
    %c0_i32_1 = arith.constant 0 : i32
    return %c0_i32, %c0_i32_0 : i32, i32
  }
  func.func @transform_4(%arg0: i32) -> (i32, i32) {
    %c0_i32 = arith.constant 0 : i32
    %c0_i32_0 = arith.constant 0 : i32
    %c0_i32_1 = arith.constant 0 : i32
    return %c0_i32, %c0_i32_0 : i32, i32
  }
  func.func @transform_5(%arg0: i32) -> (i32, i32) {
    %c0_i32 = arith.constant 0 : i32
    %c0_i32_0 = arith.constant 0 : i32
    %c0_i32_1 = arith.constant 0 : i32
    return %c0_i32, %c0_i32_0 : i32, i32
  }
  func.func @transform_6(%arg0: i32) -> (i32, i32) {
    %c0_i32 = arith.constant 0 : i32
    %c0_i32_0 = arith.constant 0 : i32
    %c0_i32_1 = arith.constant 0 : i32
    return %c0_i32, %c0_i32_0 : i32, i32
  }
  func.func @transform_7(%arg0: i32) -> (i32, i32) {
    %c0_i32 = arith.constant 0 : i32
    %c0_i32_0 = arith.constant 0 : i32
    return %arg0, %c0_i32 : i32, i32
  }
}

</mosaic_0001>

<llo_original>
// kernel: tpu_custom_call.1
$region0: #{tpu_custom_call.1}
  #allocation0 [shape = 'u32[]', space=smem, size = 0x4, offset = 0x4, fixed_abs, tag = 'smem constant byte address 0x4 - core index']
  #allocation1 [shape = 'u32[144,128]{1,0:T(1,128)}', space=vmem, size = 0x12000, scoped, tag = 'internal scratch']
  %s0 = inlined_call_operand.hbm [shape: f32[16,128], index: 0, kind: input, shape index: {}]
  %s1 = inlined_call_operand.hbm [shape: f32[128,128], index: 1, kind: input, shape index: {}]
  %s2 = inlined_call_operand.vmem [shape: f32[1,128], index: 2, kind: input, shape index: {}]
  %s3 = inlined_call_operand.hbm [shape: f32[128,128], index: 3, kind: input, shape index: {}]
  %s4 = inlined_call_operand.vmem [shape: f32[1,128], index: 4, kind: input, shape index: {}]
  %s5 = inlined_call_operand.hbm [shape: f32[128,128], index: 5, kind: input, shape index: {}]
  %s6 = inlined_call_operand.vmem [shape: f32[1,128], index: 6, kind: input, shape index: {}]
  %s7 = inlined_call_operand.hbm [shape: f32[16,128], index: 7, kind: output, shape index: {}]
  %s8 = sld [smem:[#allocation0]]
  $region54: #{tpu_custom_call.1} parent=0
    _
  %s10 = ssub.s32 1, %s8
  %s11 = scalar_select 0, %s10, %s8
  $region1: #{tpu_custom_call.1} parent=0
    #allocation2 [shape = 'u8[8192]{0}', space=vmem, size = 0x2000, scoped, tag = 'input window, operand 0, single buffered']
    #allocation3 [shape = 's32[1]{0}', space=sflag, size = 0x4, scoped, tag = 'scoped memory for tpu_custom_call.1']
    #allocation4 [shape = 's32[1]{0}', space=sflag, size = 0x4, scoped, tag = 'scoped memory for tpu_custom_call.1']
    #allocation5 [shape = 'u8[65536]{0}', space=vmem, size = 0x10000, scoped, tag = 'input window, operand 1, single buffered']
    #allocation6 [shape = 's32[1]{0}', space=sflag, size = 0x4, scoped, tag = 'scoped memory for tpu_custom_call.1']
    #allocation7 [shape = 'u8[65536]{0}', space=vmem, size = 0x10000, scoped, tag = 'input window, operand 3, single buffered']
    #allocation8 [shape = 'u8[65536]{0}', space=vmem, size = 0x10000, scoped, tag = 'input window, operand 5, single buffered']
    #allocation9 [shape = 's32[1]{0}', space=sflag, size = 0x4, scoped, tag = 'scoped memory for tpu_custom_call.1']
    #allocation10 [shape = 'u8[8192]{0}', space=vmem, size = 0x2000, scoped, tag = 'output window, operand 0, single buffered']
    %12 = vsyncpa [#allocation3], 0
    %13 = vsyncpa [#allocation6], 0
    %14 = vsyncpa [#allocation9], 0
    %15 = vsyncpa [#allocation4], 0
    // Predicated region
    $region2: #{tpu_custom_call.1} parent=1 // pred_check
      _
    $region3: #{tpu_custom_call.1} parent=1 // pred_check_branch
      %17 = sbr.rel (0) target = $region5
    $region4: #{tpu_custom_call.1} parent=1 // pred_region
      %s19 = ssub.s32 256, 256
      %20 = vsyncadd [#allocation3], %s19
      %s21 = sshll.u32 [#allocation2], 4
      %s22 = int_to_ptr.vmem [resolvable:$true] %s21
      %27 = dma.hbm_to_vmem [thread:$0]  %s0, 256, %s22, [#allocation3], 128, 128, 8
    $region5: #{tpu_custom_call.1} parent=1 // pred_fallthru
      _
    // Predicated region
    $region6: #{tpu_custom_call.1} parent=1 // pred_check
      _
    $region7: #{tpu_custom_call.1} parent=1 // pred_check_branch
      %29 = sbr.rel (0) target = $region9
    $region8: #{tpu_custom_call.1} parent=1 // pred_region
      %s31 = ssub.s32 2048, 2048
      %32 = vsyncadd [#allocation6], %s31
      %s33 = sshll.u32 [#allocation5], 4
      %s34 = int_to_ptr.vmem [resolvable:$true] %s33
      %39 = dma.hbm_to_vmem [thread:$0]  %s1, 2048, %s34, [#allocation6], 128, 128, 8
    $region9: #{tpu_custom_call.1} parent=1 // pred_fallthru
      _
    // Predicated region
    $region10: #{tpu_custom_call.1} parent=1 // pred_check
      _
    $region11: #{tpu_custom_call.1} parent=1 // pred_check_branch
      %41 = sbr.rel (0) target = $region13
    $region12: #{tpu_custom_call.1} parent=1 // pred_region
      _
    $region13: #{tpu_custom_call.1} parent=1 // pred_fallthru
      _
    // Predicated region
    $region14: #{tpu_custom_call.1} parent=1 // pred_check
      _
    $region15: #{tpu_custom_call.1} parent=1 // pred_check_branch
      %43 = sbr.rel (0) target = $region17
    $region16: #{tpu_custom_call.1} parent=1 // pred_region
      %s45 = ssub.s32 2048, 2048
      %46 = vsyncadd [#allocation6], %s45
      %s47 = sshll.u32 [#allocation7], 4
      %s48 = int_to_ptr.vmem [resolvable:$true] %s47
      %53 = dma.hbm_to_vmem [thread:$0]  %s3, 2048, %s48, [#allocation6], 128, 128, 8
    $region17: #{tpu_custom_call.1} parent=1 // pred_fallthru
      _
    // Predicated region
    $region18: #{tpu_custom_call.1} parent=1 // pred_check
      _
    $region19: #{tpu_custom_call.1} parent=1 // pred_check_branch
      %55 = sbr.rel (0) target = $region21
    $region20: #{tpu_custom_call.1} parent=1 // pred_region
      _
    $region21: #{tpu_custom_call.1} parent=1 // pred_fallthru
      _
    // Predicated region
    $region22: #{tpu_custom_call.1} parent=1 // pred_check
      _
    $region23: #{tpu_custom_call.1} parent=1 // pred_check_branch
      %57 = sbr.rel (0) target = $region25
    $region24: #{tpu_custom_call.1} parent=1 // pred_region
      %s59 = ssub.s32 2048, 2048
      %60 = vsyncadd [#allocation9], %s59
      %s61 = sshll.u32 [#allocation8], 4
      %s62 = int_to_ptr.vmem [resolvable:$true] %s61
      %67 = dma.hbm_to_vmem [thread:$0]  %s5, 2048, %s62, [#allocation9], 128, 128, 8
    $region25: #{tpu_custom_call.1} parent=1 // pred_fallthru
      _
    // Predicated region
    $region26: #{tpu_custom_call.1} parent=1 // pred_check
      _
    $region27: #{tpu_custom_call.1} parent=1 // pred_check_branch
      %69 = sbr.rel (0) target = $region29
    $region28: #{tpu_custom_call.1} parent=1 // pred_region
      _
    $region29: #{tpu_custom_call.1} parent=1 // pred_fallthru
      _
    // Predicated region
    $region30: #{tpu_custom_call.1} parent=1 // pred_check
      _
    $region31: #{tpu_custom_call.1} parent=1 // pred_check_branch
      %71 = sbr.rel (0) target = $region33
    $region32: #{tpu_custom_call.1} parent=1 // pred_region
      %72 = dma.done [#allocation3], 256
    $region33: #{tpu_custom_call.1} parent=1 // pred_fallthru
      _
    // Predicated region
    $region34: #{tpu_custom_call.1} parent=1 // pred_check
      _
    $region35: #{tpu_custom_call.1} parent=1 // pred_check_branch
      %74 = sbr.rel (0) target = $region37
    $region36: #{tpu_custom_call.1} parent=1 // pred_region
      %75 = dma.done [#allocation6], 2048
    $region37: #{tpu_custom_call.1} parent=1 // pred_fallthru
      _
    // Predicated region
    $region38: #{tpu_custom_call.1} parent=1 // pred_check
      _
    $region39: #{tpu_custom_call.1} parent=1 // pred_check_branch
      %77 = sbr.rel (0) target = $region41
    $region40: #{tpu_custom_call.1} parent=1 // pred_region
      %78 = dma.done [#allocation6], 2048
    $region41: #{tpu_custom_call.1} parent=1 // pred_fallthru
      _
    // Predicated region
    $region42: #{tpu_custom_call.1} parent=1 // pred_check
      _
    $region43: #{tpu_custom_call.1} parent=1 // pred_check_branch
      %80 = sbr.rel (0) target = $region45
    $region44: #{tpu_custom_call.1} parent=1 // pred_region
      %81 = dma.done [#allocation9], 2048
    $region45: #{tpu_custom_call.1} parent=1 // pred_fallthru
      _
    %v82 = vld [vmem:[#allocation2] sm:$0xff]
    %v83 = vld [vmem:[#allocation2 + $0x8] sm:$0xff]
    %v84 = vld [vmem:[#allocation5] sm:$0xff]
    %v85 = vld [vmem:[#allocation5 + $0x8] sm:$0xff]
    %v86 = vld [vmem:[#allocation5 + $0x10] sm:$0xff]
    %v87 = vld [vmem:[#allocation5 + $0x18] sm:$0xff]
    %v88 = vld [vmem:[#allocation5 + $0x20] sm:$0xff]
    %v89 = vld [vmem:[#allocation5 + $0x28] sm:$0xff]
    %v90 = vld [vmem:[#allocation5 + $0x30] sm:$0xff]
    %v91 = vld [vmem:[#allocation5 + $0x38] sm:$0xff]
    %v92 = vld [vmem:[#allocation5 + $0x40] sm:$0xff]
    %v93 = vld [vmem:[#allocation5 + $0x48] sm:$0xff]
    %v94 = vld [vmem:[#allocation5 + $0x50] sm:$0xff]
    %v95 = vld [vmem:[#allocation5 + $0x58] sm:$0xff]
    %v96 = vld [vmem:[#allocation5 + $0x60] sm:$0xff]
    %v97 = vld [vmem:[#allocation5 + $0x68] sm:$0xff]
    %v98 = vld [vmem:[#allocation5 + $0x70] sm:$0xff]
    %v99 = vld [vmem:[#allocation5 + $0x78] sm:$0xff]
    %v100 = vld [vmem:[%s2] sm:$0x1]
    %v102 = vlaneseq
    %v103 = vshrl.u32 %v102, 7
    %v104 = vsub.s32 0, %v103
    %v105 = vrot.slane %v100, %v104
    %107 = vmatprep.subr.mxu0 0.0
    %108 = vmatpush1.msra.mxu0 %v84
    %109 = vmatprep.subr.mxu0 0.0
    %110 = vmatpush1.msra.mxu0 %v85
    %111 = vmatprep.subr.mxu0 0.0
    %112 = vmatpush1.msra.mxu0 %v86
    %113 = vmatprep.subr.mxu0 0.0
    %114 = vmatpush1.msra.mxu0 %v87
    %115 = vmatprep.subr.mxu0 0.0
    %116 = vmatpush1.msra.mxu0 %v88
    %117 = vmatprep.subr.mxu0 0.0
    %118 = vmatpush1.msra.mxu0 %v89
    %119 = vmatprep.subr.mxu0 0.0
    %120 = vmatpush1.msra.mxu0 %v90
    %121 = vmatprep.subr.mxu0 0.0
    %122 = vmatpush1.msra.mxu0 %v91
    %123 = vmatprep.subr.mxu0 0.0
    %124 = vmatpush1.msra.mxu0 %v92
    %125 = vmatprep.subr.mxu0 0.0
    %126 = vmatpush1.msra.mxu0 %v93
    %127 = vmatprep.subr.mxu0 0.0
    %128 = vmatpush1.msra.mxu0 %v94
    %129 = vmatprep.subr.mxu0 0.0
    %130 = vmatpush1.msra.mxu0 %v95
    %131 = vmatprep.subr.mxu0 0.0
    %132 = vmatpush1.msra.mxu0 %v96
    %133 = vmatprep.subr.mxu0 0.0
    %134 = vmatpush1.msra.mxu0 %v97
    %135 = vmatprep.subr.mxu0 0.0
    %136 = vmatpush1.msra.mxu0 %v98
    %137 = vmatprep.subr.mxu0 0.0
    %138 = vmatpush1.msra.mxu0 %v99
    %139 = vmatprep.subr.mxu0 0.0
    %140 = vmatpush1.msra.mxu0 0.0
    %141 = vmatprep.subr.mxu0 0.0
    %142 = vmatpush1.msra.mxu0 0.0
    %143 = vmatprep.subr.mxu0 0.0
    %144 = vmatpush1.msra.mxu0 0.0
    %145 = vmatprep.subr.mxu0 0.0
    %146 = vmatpush1.msra.mxu0 0.0
    %147 = vmatprep.subr.mxu0 0.0
    %148 = vmatpush1.msra.mxu0 0.0
    %149 = vmatprep.subr.mxu0 0.0
    %150 = vmatpush1.msra.mxu0 0.0
    %151 = vmatprep.subr.mxu0 0.0
    %152 = vmatpush1.msra.mxu0 0.0
    %153 = vmatprep.subr.mxu0 0.0
    %154 = vmatpush1.msra.mxu0 0.0
    %155 = vmatprep.subr.mxu0 0.0
    %156 = vmatpush1.msra.mxu0 0.0
    %157 = vmatprep.subr.mxu0 0.0
    %158 = vmatpush1.msra.mxu0 0.0
    %159 = vmatprep.subr.mxu0 0.0
    %160 = vmatpush1.msra.mxu0 0.0
    %161 = vmatprep.subr.mxu0 0.0
    %162 = vmatpush1.msra.mxu0 0.0
    %163 = vmatprep.subr.mxu0 0.0
    %164 = vmatpush1.msra.mxu0 0.0
    %165 = vmatprep.subr.mxu0 0.0
    %166 = vmatpush1.msra.mxu0 0.0
    %167 = vmatprep.subr.mxu0 0.0
    %168 = vmatpush1.msra.mxu0 0.0
    %169 = vmatprep.subr.mxu0 0.0
    %170 = vmatpush1.msra.mxu0 0.0
    %171 = vmatprep.mubr.f32.mxu0 0.0
    %172 = vmatmul.mubr.f32.gmra.mrb[0].mxu0 %v82
    %v173 = vpop.f32.mrb[0].mxu0
    %v174 = vadd.f32 %v105, %v173
    %v175 = vpop.f32.mrb[0].mxu0
    %176 = vmatprep.mubr.f32.mxu0 0.0
    %177 = vmatmul.mubr.f32.gmra.mrb[0].mxu0 %v83
    %v178 = vpop.f32.mrb[0].mxu0
    %v179 = vadd.f32 %v105, %v178
    %v180 = vpop.f32.mrb[0].mxu0
    %181 = vdwg.mxu0
    %v182 = vmul.f32 %v174, 0.5
    %v183 = vmul.f32 %v179, 0.5
    %v184 = vmul.f32 %v174, 0.70710677
    %v185 = vmul.f32 %v179, 0.70710677
    %v186 = verf.f32.pop %v184
    %v187 = verf.f32.pop %v185
    %v188 = vadd.f32 %v186, 1.0
    %v189 = vadd.f32 %v187, 1.0
    %v190 = vmul.f32 %v182, %v188
    %v191 = vmul.f32 %v183, %v189
    %v192 = vld [vmem:[#allocation7] sm:$0xff]
    %v193 = vld [vmem:[#allocation7 + $0x8] sm:$0xff]
    %v194 = vld [vmem:[#allocation7 + $0x10] sm:$0xff]
    %v195 = vld [vmem:[#allocation7 + $0x18] sm:$0xff]
    %v196 = vld [vmem:[#allocation7 + $0x20] sm:$0xff]
    %v197 = vld [vmem:[#allocation7 + $0x28] sm:$0xff]
    %v198 = vld [vmem:[#allocation7 + $0x30] sm:$0xff]
    %v199 = vld [vmem:[#allocation7 + $0x38] sm:$0xff]
    %v200 = vld [vmem:[#allocation7 + $0x40] sm:$0xff]
    %v201 = vld [vmem:[#allocation7 + $0x48] sm:$0xff]
    %v202 = vld [vmem:[#allocation7 + $0x50] sm:$0xff]
    %v203 = vld [vmem:[#allocation7 + $0x58] sm:$0xff]
    %v204 = vld [vmem:[#allocation7 + $0x60] sm:$0xff]
    %v205 = vld [vmem:[#allocation7 + $0x68] sm:$0xff]
    %v206 = vld [vmem:[#allocation7 + $0x70] sm:$0xff]
    %v207 = vld [vmem:[#allocation7 + $0x78] sm:$0xff]
    %v208 = vld [vmem:[%s4] sm:$0x1]
    %v210 = vlaneseq
    %v211 = vshrl.u32 %v210, 7
    %v212 = vsub.s32 0, %v211
    %v213 = vrot.slane %v208, %v212
    %215 = vmatprep.subr.mxu0 0.0
    %216 = vmatpush1.msra.mxu0 %v192
    %217 = vmatprep.subr.mxu0 0.0
    %218 = vmatpush1.msra.mxu0 %v193
    %219 = vmatprep.subr.mxu0 0.0
    %220 = vmatpush1.msra.mxu0 %v194
    %221 = vmatprep.subr.mxu0 0.0
    %222 = vmatpush1.msra.mxu0 %v195
    %223 = vmatprep.subr.mxu0 0.0
    %224 = vmatpush1.msra.mxu0 %v196
    %225 = vmatprep.subr.mxu0 0.0
    %226 = vmatpush1.msra.mxu0 %v197
    %227 = vmatprep.subr.mxu0 0.0
    %228 = vmatpush1.msra.mxu0 %v198
    %229 = vmatprep.subr.mxu0 0.0
    %230 = vmatpush1.msra.mxu0 %v199
    %231 = vmatprep.subr.mxu0 0.0
    %232 = vmatpush1.msra.mxu0 %v200
    %233 = vmatprep.subr.mxu0 0.0
    %234 = vmatpush1.msra.mxu0 %v201
    %235 = vmatprep.subr.mxu0 0.0
    %236 = vmatpush1.msra.mxu0 %v202
    %237 = vmatprep.subr.mxu0 0.0
    %238 = vmatpush1.msra.mxu0 %v203
    %239 = vmatprep.subr.mxu0 0.0
    %240 = vmatpush1.msra.mxu0 %v204
    %241 = vmatprep.subr.mxu0 0.0
    %242 = vmatpush1.msra.mxu0 %v205
    %243 = vmatprep.subr.mxu0 0.0
    %244 = vmatpush1.msra.mxu0 %v206
    %245 = vmatprep.subr.mxu0 0.0
    %246 = vmatpush1.msra.mxu0 %v207
    %247 = vmatprep.subr.mxu0 0.0
    %248 = vmatpush1.msra.mxu0 0.0
    %249 = vmatprep.subr.mxu0 0.0
    %250 = vmatpush1.msra.mxu0 0.0
    %251 = vmatprep.subr.mxu0 0.0
    %252 = vmatpush1.msra.mxu0 0.0
    %253 = vmatprep.subr.mxu0 0.0
    %254 = vmatpush1.msra.mxu0 0.0
    %255 = vmatprep.subr.mxu0 0.0
    %256 = vmatpush1.msra.mxu0 0.0
    %257 = vmatprep.subr.mxu0 0.0
    %258 = vmatpush1.msra.mxu0 0.0
    %259 = vmatprep.subr.mxu0 0.0
    %260 = vmatpush1.msra.mxu0 0.0
    %261 = vmatprep.subr.mxu0 0.0
    %262 = vmatpush1.msra.mxu0 0.0
    %263 = vmatprep.subr.mxu0 0.0
    %264 = vmatpush1.msra.mxu0 0.0
    %265 = vmatprep.subr.mxu0 0.0
    %266 = vmatpush1.msra.mxu0 0.0
    %267 = vmatprep.subr.mxu0 0.0
    %268 = vmatpush1.msra.mxu0 0.0
    %269 = vmatprep.subr.mxu0 0.0
    %270 = vmatpush1.msra.mxu0 0.0
    %271 = vmatprep.subr.mxu0 0.0
    %272 = vmatpush1.msra.mxu0 0.0
    %273 = vmatprep.subr.mxu0 0.0
    %274 = vmatpush1.msra.mxu0 0.0
    %275 = vmatprep.subr.mxu0 0.0
    %276 = vmatpush1.msra.mxu0 0.0
    %277 = vmatprep.subr.mxu0 0.0
    %278 = vmatpush1.msra.mxu0 0.0
    %279 = vmatprep.mubr.f32.mxu0 0.0
    %280 = vmatmul.mubr.f32.gmra.mrb[0].mxu0 %v190
    %v281 = vpop.f32.mrb[0].mxu0
    %v282 = vadd.f32 %v213, %v281
    %v283 = vpop.f32.mrb[0].mxu0
    %284 = vmatprep.mubr.f32.mxu0 0.0
    %285 = vmatmul.mubr.f32.gmra.mrb[0].mxu0 %v191
    %v286 = vpop.f32.mrb[0].mxu0
    %v287 = vadd.f32 %v213, %v286
    %v288 = vpop.f32.mrb[0].mxu0
    %289 = vdwg.mxu0
    %v290 = vmul.f32 %v282, 0.5
    %v291 = vmul.f32 %v287, 0.5
    %v292 = vmul.f32 %v282, 0.70710677
    %v293 = vmul.f32 %v287, 0.70710677
    %v294 = verf.f32.pop %v292
    %v295 = verf.f32.pop %v293
    %v296 = vadd.f32 %v294, 1.0
    %v297 = vadd.f32 %v295, 1.0
    %v298 = vmul.f32 %v290, %v296
    %v299 = vmul.f32 %v291, %v297
    %v300 = vld [vmem:[#allocation8] sm:$0xff]
    %v301 = vld [vmem:[#allocation8 + $0x8] sm:$0xff]
    %v302 = vld [vmem:[#allocation8 + $0x10] sm:$0xff]
    %v303 = vld [vmem:[#allocation8 + $0x18] sm:$0xff]
    %v304 = vld [vmem:[#allocation8 + $0x20] sm:$0xff]
    %v305 = vld [vmem:[#allocation8 + $0x28] sm:$0xff]
    %v306 = vld [vmem:[#allocation8 + $0x30] sm:$0xff]
    %v307 = vld [vmem:[#allocation8 + $0x38] sm:$0xff]
    %v308 = vld [vmem:[#allocation8 + $0x40] sm:$0xff]
    %v309 = vld [vmem:[#allocation8 + $0x48] sm:$0xff]
    %v310 = vld [vmem:[#allocation8 + $0x50] sm:$0xff]
    %v311 = vld [vmem:[#allocation8 + $0x58] sm:$0xff]
    %v312 = vld [vmem:[#allocation8 + $0x60] sm:$0xff]
    %v313 = vld [vmem:[#allocation8 + $0x68] sm:$0xff]
    %v314 = vld [vmem:[#allocation8 + $0x70] sm:$0xff]
    %v315 = vld [vmem:[#allocation8 + $0x78] sm:$0xff]
    %v316 = vld [vmem:[%s6] sm:$0x1]
    %v318 = vlaneseq
    %v319 = vshrl.u32 %v318, 7
    %v320 = vsub.s32 0, %v319
    %v321 = vrot.slane %v316, %v320
    %323 = vmatprep.subr.mxu0 0.0
    %324 = vmatpush1.msra.mxu0 %v300
    %325 = vmatprep.subr.mxu0 0.0
    %326 = vmatpush1.msra.mxu0 %v301
    %327 = vmatprep.subr.mxu0 0.0
    %328 = vmatpush1.msra.mxu0 %v302
    %329 = vmatprep.subr.mxu0 0.0
    %330 = vmatpush1.msra.mxu0 %v303
    %331 = vmatprep.subr.mxu0 0.0
    %332 = vmatpush1.msra.mxu0 %v304
    %333 = vmatprep.subr.mxu0 0.0
    %334 = vmatpush1.msra.mxu0 %v305
    %335 = vmatprep.subr.mxu0 0.0
    %336 = vmatpush1.msra.mxu0 %v306
    %337 = vmatprep.subr.mxu0 0.0
    %338 = vmatpush1.msra.mxu0 %v307
    %339 = vmatprep.subr.mxu0 0.0
    %340 = vmatpush1.msra.mxu0 %v308
    %341 = vmatprep.subr.mxu0 0.0
    %342 = vmatpush1.msra.mxu0 %v309
    %343 = vmatprep.subr.mxu0 0.0
    %344 = vmatpush1.msra.mxu0 %v310
    %345 = vmatprep.subr.mxu0 0.0
    %346 = vmatpush1.msra.mxu0 %v311
    %347 = vmatprep.subr.mxu0 0.0
    %348 = vmatpush1.msra.mxu0 %v312
    %349 = vmatprep.subr.mxu0 0.0
    %350 = vmatpush1.msra.mxu0 %v313
    %351 = vmatprep.subr.mxu0 0.0
    %352 = vmatpush1.msra.mxu0 %v314
    %353 = vmatprep.subr.mxu0 0.0
    %354 = vmatpush1.msra.mxu0 %v315
    %355 = vmatprep.subr.mxu0 0.0
    %356 = vmatpush1.msra.mxu0 0.0
    %357 = vmatprep.subr.mxu0 0.0
    %358 = vmatpush1.msra.mxu0 0.0
    %359 = vmatprep.subr.mxu0 0.0
    %360 = vmatpush1.msra.mxu0 0.0
    %361 = vmatprep.subr.mxu0 0.0
    %362 = vmatpush1.msra.mxu0 0.0
    %363 = vmatprep.subr.mxu0 0.0
    %364 = vmatpush1.msra.mxu0 0.0
    %365 = vmatprep.subr.mxu0 0.0
    %366 = vmatpush1.msra.mxu0 0.0
    %367 = vmatprep.subr.mxu0 0.0
    %368 = vmatpush1.msra.mxu0 0.0
    %369 = vmatprep.subr.mxu0 0.0
    %370 = vmatpush1.msra.mxu0 0.0
    %371 = vmatprep.subr.mxu0 0.0
    %372 = vmatpush1.msra.mxu0 0.0
    %373 = vmatprep.subr.mxu0 0.0
    %374 = vmatpush1.msra.mxu0 0.0
    %375 = vmatprep.subr.mxu0 0.0
    %376 = vmatpush1.msra.mxu0 0.0
    %377 = vmatprep.subr.mxu0 0.0
    %378 = vmatpush1.msra.mxu0 0.0
    %379 = vmatprep.subr.mxu0 0.0
    %380 = vmatpush1.msra.mxu0 0.0
    %381 = vmatprep.subr.mxu0 0.0
    %382 = vmatpush1.msra.mxu0 0.0
    %383 = vmatprep.subr.mxu0 0.0
    %384 = vmatpush1.msra.mxu0 0.0
    %385 = vmatprep.subr.mxu0 0.0
    %386 = vmatpush1.msra.mxu0 0.0
    %387 = vmatprep.mubr.f32.mxu0 0.0
    %388 = vmatmul.mubr.f32.gmra.mrb[0].mxu0 %v298
    %v389 = vpop.f32.mrb[0].mxu0
    %v390 = vadd.f32 %v321, %v389
    %v391 = vpop.f32.mrb[0].mxu0
    %392 = vmatprep.mubr.f32.mxu0 0.0
    %393 = vmatmul.mubr.f32.gmra.mrb[0].mxu0 %v299
    %v394 = vpop.f32.mrb[0].mxu0
    %v395 = vadd.f32 %v321, %v394
    %v396 = vpop.f32.mrb[0].mxu0
    %397 = vdwg.mxu0
    %398 = vst [vmem:[#allocation10] sm:$0xff] %v390
    %399 = vst [vmem:[#allocation10 + $0x8] sm:$0xff] %v395
    // Predicated region
    $region46: #{tpu_custom_call.1} parent=1 // pred_check
      _
    $region47: #{tpu_custom_call.1} parent=1 // pred_check_branch
      %401 = sbr.rel (0) target = $region49
    $region48: #{tpu_custom_call.1} parent=1 // pred_region
      %s403 = ssub.s32 256, 256
      %404 = vsyncadd [#allocation4], %s403
      %s405 = sshll.u32 [#allocation10], 4
      %s406 = int_to_ptr.vmem [resolvable:$true] %s405
      %411 = dma.vmem_to_hbm [thread:$0]  %s406, 256, %s7, [#allocation4], 128, 128, 8
    $region49: #{tpu_custom_call.1} parent=1 // pred_fallthru
      _
    // Predicated region
    $region50: #{tpu_custom_call.1} parent=1 // pred_check
      _
    $region51: #{tpu_custom_call.1} parent=1 // pred_check_branch
      %413 = sbr.rel (0) target = $region53
    $region52: #{tpu_custom_call.1} parent=1 // pred_region
      %414 = dma.done [#allocation4], 256
    $region53: #{tpu_custom_call.1} parent=1 // pred_fallthru
      _
    %415 = vsyncpa [#allocation3], 1
    %416 = vsyncpa [#allocation6], 1
    %417 = vsyncpa [#allocation9], 1
    %418 = vsyncpa [#allocation4], 1

</llo_original>
